<compile_context>
chip_gen: v7x
topology: tpu7x:2x2x1
jax: 0.10.0
libtpu: 0.0.40
codegen_flags: <defaults>
</compile_context>

<pallas_src>
import functools
import math

import jax
import jax.numpy as jnp
from jax.experimental import pallas as pl
from jax.experimental.pallas import tpu as pltpu


_INV_SQRT2 = 1.0 / math.sqrt(2.0)   # Python float -> literal, not a captured const


def _round_up(x, m):
    return ((x + m - 1) // m) * m


def _entity_mlm_head_kernel(x_ref, w1_ref, b1_ref, g_ref, beta_ref,
                            w2_ref, b2_ref, o_ref, h_scr, *, eps):
    """One (row-tile i, ent-tile j) grid step.

    NOTE: the h_scr caching below relies on the j (ent) axis being the
    innermost grid axis, iterated sequentially ("arbitrary") and restarting
    at 0 for every i.  Do not mark it "parallel" or reorder the grid.
    """
    j = pl.program_id(1)

    @pl.when(j == 0)
    def _():
        x = x_ref[...].astype(jnp.float32)
        # dense: x @ W1^T + b1   (weights are stored pre-transposed as (H, H))
        h = jnp.dot(x, w1_ref[...], preferred_element_type=jnp.float32) + b1_ref[...]
        # gelu (exact / erf form, matching torch.nn.functional.gelu default)
        h = 0.5 * h * (1.0 + jax.lax.erf(h * _INV_SQRT2))
        # LayerNorm over the hidden (last) axis — kept in f32.
        mu = jnp.mean(h, axis=-1, keepdims=True)
        var = jnp.mean((h - mu) * (h - mu), axis=-1, keepdims=True)
        hn = (h - mu) * jax.lax.rsqrt(var + eps)
        # Cache transformed activations as bf16 for the MXU-heavy decoder.
        h_scr[...] = (hn * g_ref[...] + beta_ref[...]).astype(h_scr.dtype)

    # decoder: h @ W2 (tiled over ent_num, bf16 operands, f32 accumulate) + bias
    out = jnp.dot(h_scr[...], w2_ref[...], preferred_element_type=jnp.float32)
    out = out + b2_ref[...]
    o_ref[...] = out.astype(o_ref.dtype)


def entity_mlm_head(hidden_states, params, *, eps=1e-12, tm=128, tn=512):
    """hidden_states: [B, S, H]; returns logits [B, S, E]."""
    w1, b1, gamma, beta, w2, b2 = params
    B, S, H = hidden_states.shape
    E = w2.shape[1]
    N = B * S

    # Effective tiles: large by default, shrunk (but kept (8,128)-aligned) for
    # small problems; pad N / E up to a tile multiple and slice at the end.
    tm_eff = min(tm, _round_up(N, 8))
    tn_eff = min(tn, _round_up(E, 128))
    N_p = _round_up(N, tm_eff)
    E_p = _round_up(E, tn_eff)

    x = hidden_states.reshape(N, H)
    if N_p != N:
        x = jnp.pad(x, ((0, N_p - N), (0, 0)))

    w1_f32 = w1.astype(jnp.float32)
    b1_2d = b1.astype(jnp.float32).reshape(1, H)
    gamma_2d = gamma.astype(jnp.float32).reshape(1, H)
    beta_2d = beta.astype(jnp.float32).reshape(1, H)

    # Decoder operands in bf16 (MXU-native on v5e/v6e/v7x); bias stays f32.
    w2_bf16 = w2.astype(jnp.bfloat16)
    b2_f32 = b2.astype(jnp.float32)
    if E_p != E:
        w2_bf16 = jnp.pad(w2_bf16, ((0, 0), (0, E_p - E)))
        b2_f32 = jnp.pad(b2_f32, ((0, E_p - E),))
    b2_2d = b2_f32.reshape(1, E_p)

    out_dtype = hidden_states.dtype
    out_bytes = jnp.dtype(out_dtype).itemsize
    x_bytes = jnp.dtype(x.dtype).itemsize

    # VMEM budget: every pipelined input/output block is double-buffered.
    block_bytes = (
        H * H * 4                # W1 (f32, resident block)
        + 3 * H * 4              # b1 / gamma / beta
        + H * tn_eff * 2         # W2 tile (bf16)
        + tn_eff * 4             # b2 tile
        + tm_eff * H * x_bytes   # x tile
        + tm_eff * tn_eff * out_bytes  # output tile
    )
    vmem_needed = 2 * block_bytes + tm_eff * H * 2  # + h_scr scratch (bf16)
    vmem_limit = min(int(1.5 * vmem_needed) + (2 << 20), 96 << 20)

    cost = pl.CostEstimate(
        flops=2 * N_p * H * (H + E_p),
        transcendentals=N_p * H,
        bytes_accessed=(N_p * H * x_bytes + H * H * 4 + H * E_p * 2
                        + N_p * E_p * out_bytes),
    )

    kernel = functools.partial(_entity_mlm_head_kernel, eps=float(eps))

    out = pl.pallas_call(
        kernel,
        out_shape=jax.ShapeDtypeStruct((N_p, E_p), out_dtype),
        grid_spec=pltpu.PrefetchScalarGridSpec(
            num_scalar_prefetch=0,
            grid=(N_p // tm_eff, E_p // tn_eff),
            in_specs=[
                pl.BlockSpec((tm_eff, H), lambda i, j: (i, 0)),   # x rows
                pl.BlockSpec((H, H), lambda i, j: (0, 0)),        # dense weight (pre-transposed)
                pl.BlockSpec((1, H), lambda i, j: (0, 0)),        # dense bias
                pl.BlockSpec((1, H), lambda i, j: (0, 0)),        # LN gamma
                pl.BlockSpec((1, H), lambda i, j: (0, 0)),        # LN beta
                pl.BlockSpec((H, tn_eff), lambda i, j: (0, j)),   # decoder weight (bf16, pre-T)
                pl.BlockSpec((1, tn_eff), lambda i, j: (0, j)),   # decoder bias
            ],
            out_specs=pl.BlockSpec((tm_eff, tn_eff), lambda i, j: (i, j)),
            scratch_shapes=[pltpu.VMEM((tm_eff, H), jnp.bfloat16)],
        ),
        compiler_params=pltpu.CompilerParams(
            dimension_semantics=("parallel", "arbitrary"),
            vmem_limit_bytes=vmem_limit,
        ),
        cost_estimate=cost,
    )(x, w1_f32, b1_2d, gamma_2d, beta_2d, w2_bf16, b2_2d)

    return out[:N, :E].reshape(B, S, E)


def _reference(hidden_states, params, eps=1e-12):
    w1, b1, gamma, beta, w2, b2 = params
    h = hidden_states.astype(jnp.float32) @ w1 + b1
    h = 0.5 * h * (1.0 + jax.lax.erf(h / jnp.sqrt(2.0)))
    mu = jnp.mean(h, axis=-1, keepdims=True)
    var = jnp.mean((h - mu) ** 2, axis=-1, keepdims=True)
    h = (h - mu) * jax.lax.rsqrt(var + eps)
    h = h * gamma + beta
    return h @ w2 + b2


if __name__ == "__main__":
    # Small shapes consistent with the module: hidden_size=128, ent_num=256.
    B, S, H, E = 2, 8, 128, 256
    key = jax.random.PRNGKey(0)
    kx, kw1, kb1, kg, kbt, kw2, kb2 = jax.random.split(key, 7)

    hidden_states = jax.random.normal(kx, (B, S, H), dtype=jnp.float32)

    # Deterministic parameter init (weights stored pre-transposed for x @ W).
    w1 = 0.02 * jax.random.normal(kw1, (H, H), dtype=jnp.float32)    # dense.weight^T
    b1 = 0.02 * jax.random.normal(kb1, (H,), dtype=jnp.float32)      # dense.bias
    gamma = jnp.ones((H,), dtype=jnp.float32)                        # LayerNorm.weight
    beta = jnp.zeros((H,), dtype=jnp.float32)                        # LayerNorm.bias
    w2 = 0.02 * jax.random.normal(kw2, (H, E), dtype=jnp.float32)    # decoder.weight^T
    b2 = jnp.zeros((E,), dtype=jnp.float32)                          # self.bias (decoder bias)

    params = (w1, b1, gamma, beta, w2, b2)

    out = entity_mlm_head(hidden_states, params)
    out = jax.block_until_ready(out)

    ref = _reference(hidden_states, params)
    assert out.shape == (B, S, E)
    # Decoder matmul uses bf16 operands (f32 accumulation) -> looser tolerance.
    assert jnp.allclose(out, ref, atol=2e-2, rtol=2e-2), "mismatch vs reference"

    print("KERNEL_OK")
</pallas_src>

<mosaic_0001>
module attributes {stable_mosaic.version = 11 : i64} {
  func.func @_entity_mlm_head_kernel(%arg0: i32, %arg1: i32, %arg2: memref<16x128xf32, #tpu.memory_space<vmem>>, %arg3: memref<128x128xf32, #tpu.memory_space<vmem>>, %arg4: memref<1x128xf32, #tpu.memory_space<vmem>>, %arg5: memref<1x128xf32, #tpu.memory_space<vmem>>, %arg6: memref<1x128xf32, #tpu.memory_space<vmem>>, %arg7: memref<128x256xbf16, #tpu.memory_space<vmem>>, %arg8: memref<1x256xf32, #tpu.memory_space<vmem>>, %arg9: memref<16x256xf32, #tpu.memory_space<vmem>>, %arg10: memref<16x128xbf16, #tpu.memory_space<vmem>>) attributes {dimension_semantics = [#tpu.dimension_semantics<parallel>, #tpu.dimension_semantics<arbitrary>], iteration_bounds = array<i64: 1, 1>, scalar_prefetch = 0 : i64, scratch_operands = 1 : i64, tpu.core_type = #tpu.core_type<tc>, window_params = [{transform_indices = @transform_0, window_bounds = array<i64: 16, 128>}, {pipeline_mode = #tpu.pipeline_mode<synchronous>, transform_indices = @transform_1, window_bounds = array<i64: 128, 128>}, {pipeline_mode = #tpu.pipeline_mode<synchronous>, transform_indices = @transform_2, window_bounds = array<i64: 1, 128>}, {pipeline_mode = #tpu.pipeline_mode<synchronous>, transform_indices = @transform_3, window_bounds = array<i64: 1, 128>}, {pipeline_mode = #tpu.pipeline_mode<synchronous>, transform_indices = @transform_4, window_bounds = array<i64: 1, 128>}, {transform_indices = @transform_5, window_bounds = array<i64: 128, 256>}, {transform_indices = @transform_6, window_bounds = array<i64: 1, 256>}, {transform_indices = @transform_7, window_bounds = array<i64: 16, 256>}]} {
    %c0_i32 = arith.constant 0 : i32
    %0 = arith.cmpi eq, %arg1, %c0_i32 : i32
    %1 = arith.extui %0 : i1 to i32
    %c0_i32_0 = arith.constant 0 : i32
    %2 = arith.cmpi ne, %1, %c0_i32_0 : i32
    scf.if %2 {
      %c0_8 = arith.constant 0 : index
      %c0_9 = arith.constant 0 : index
      %10 = vector.load %arg2[%c0_8, %c0_9] : memref<16x128xf32, #tpu.memory_space<vmem>>, vector<16x128xf32>
      %c0_10 = arith.constant 0 : index
      %c0_11 = arith.constant 0 : index
      %11 = vector.load %arg3[%c0_10, %c0_11] : memref<128x128xf32, #tpu.memory_space<vmem>>, vector<128x128xf32>
      %cst_12 = arith.constant dense<0.000000e+00> : vector<16x128xf32>
      %12 = tpu.matmul %10, %11, %cst_12 {dimension_numbers = #tpu.dot_dimension_numbers<[1], [0], [0], [1], [0, 0, 1, 1], [], []>} : vector<16x128xf32>, vector<128x128xf32>, vector<16x128xf32> -> vector<16x128xf32>
      %c0_13 = arith.constant 0 : index
      %c0_14 = arith.constant 0 : index
      %13 = vector.load %arg4[%c0_13, %c0_14] : memref<1x128xf32, #tpu.memory_space<vmem>>, vector<1x128xf32>
      %14 = vector.broadcast %13 : vector<1x128xf32> to vector<16x128xf32>
      %15 = arith.addf %12, %14 : vector<16x128xf32>
      %cst_15 = arith.constant 5.000000e-01 : f32
      %16 = vector.broadcast %cst_15 : f32 to vector<16x128xf32>
      %17 = arith.mulf %16, %15 : vector<16x128xf32>
      %cst_16 = arith.constant 0.707106769 : f32
      %18 = vector.broadcast %cst_16 : f32 to vector<16x128xf32>
      %19 = arith.mulf %15, %18 : vector<16x128xf32>
      %20 = math.erf %19 : vector<16x128xf32>
      %cst_17 = arith.constant 1.000000e+00 : f32
      %21 = vector.broadcast %cst_17 : f32 to vector<16x128xf32>
      %22 = arith.addf %21, %20 : vector<16x128xf32>
      %23 = arith.mulf %17, %22 : vector<16x128xf32>
      %cst_18 = arith.constant dense<0.000000e+00> : vector<16xf32>
      %24 = vector.multi_reduction <add>, %23, %cst_18 [1] : vector<16x128xf32> to vector<16xf32>
      %25 = vector.shape_cast %24 : vector<16xf32> to vector<16x1xf32>
      %cst_19 = arith.constant 1.280000e+02 : f32
      %26 = vector.broadcast %cst_19 : f32 to vector<16x1xf32>
      %27 = arith.divf %25, %26 : vector<16x1xf32>
      %28 = vector.broadcast %27 : vector<16x1xf32> to vector<16x128xf32>
      %29 = arith.subf %23, %28 : vector<16x128xf32>
      %30 = vector.broadcast %27 : vector<16x1xf32> to vector<16x128xf32>
      %31 = arith.subf %23, %30 : vector<16x128xf32>
      %32 = arith.mulf %29, %31 : vector<16x128xf32>
      %cst_20 = arith.constant dense<0.000000e+00> : vector<16xf32>
      %33 = vector.multi_reduction <add>, %32, %cst_20 [1] : vector<16x128xf32> to vector<16xf32>
      %34 = vector.shape_cast %33 : vector<16xf32> to vector<16x1xf32>
      %cst_21 = arith.constant 1.280000e+02 : f32
      %35 = vector.broadcast %cst_21 : f32 to vector<16x1xf32>
      %36 = arith.divf %34, %35 : vector<16x1xf32>
      %37 = vector.broadcast %27 : vector<16x1xf32> to vector<16x128xf32>
      %38 = arith.subf %23, %37 : vector<16x128xf32>
      %cst_22 = arith.constant 9.99999996E-13 : f32
      %39 = vector.broadcast %cst_22 : f32 to vector<16x1xf32>
      %40 = arith.addf %36, %39 : vector<16x1xf32>
      %41 = math.rsqrt %40 : vector<16x1xf32>
      %42 = vector.broadcast %41 : vector<16x1xf32> to vector<16x128xf32>
      %43 = arith.mulf %38, %42 : vector<16x128xf32>
      %c0_23 = arith.constant 0 : index
      %c0_24 = arith.constant 0 : index
      %44 = vector.load %arg5[%c0_23, %c0_24] : memref<1x128xf32, #tpu.memory_space<vmem>>, vector<1x128xf32>
      %45 = vector.broadcast %44 : vector<1x128xf32> to vector<16x128xf32>
      %46 = arith.mulf %43, %45 : vector<16x128xf32>
      %c0_25 = arith.constant 0 : index
      %c0_26 = arith.constant 0 : index
      %47 = vector.load %arg6[%c0_25, %c0_26] : memref<1x128xf32, #tpu.memory_space<vmem>>, vector<1x128xf32>
      %48 = vector.broadcast %47 : vector<1x128xf32> to vector<16x128xf32>
      %49 = arith.addf %46, %48 : vector<16x128xf32>
      %50 = arith.truncf %49 : vector<16x128xf32> to vector<16x128xbf16>
      %c0_27 = arith.constant 0 : index
      %c0_28 = arith.constant 0 : index
      %51 = vector.load %arg10[%c0_27, %c0_28] : memref<16x128xbf16, #tpu.memory_space<vmem>>, vector<16x128xbf16>
      tpu.vector_store %arg10[%c0_27, %c0_28], %50 {strides = array<i32>} : memref<16x128xbf16, #tpu.memory_space<vmem>>, vector<16x128xbf16>,
    } else {
    }
    %c0 = arith.constant 0 : index
    %c0_1 = arith.constant 0 : index
    %3 = vector.load %arg10[%c0, %c0_1] : memref<16x128xbf16, #tpu.memory_space<vmem>>, vector<16x128xbf16>
    %c0_2 = arith.constant 0 : index
    %c0_3 = arith.constant 0 : index
    %4 = vector.load %arg7[%c0_2, %c0_3] : memref<128x256xbf16, #tpu.memory_space<vmem>>, vector<128x256xbf16>
    %cst = arith.constant dense<0.000000e+00> : vector<16x256xf32>
    %5 = tpu.matmul %3, %4, %cst {dimension_numbers = #tpu.dot_dimension_numbers<[1], [0], [0], [1], [0, 0, 1, 1], [], []>} : vector<16x128xbf16>, vector<128x256xbf16>, vector<16x256xf32> -> vector<16x256xf32>
    %c0_4 = arith.constant 0 : index
    %c0_5 = arith.constant 0 : index
    %6 = vector.load %arg8[%c0_4, %c0_5] : memref<1x256xf32, #tpu.memory_space<vmem>>, vector<1x256xf32>
    %7 = vector.broadcast %6 : vector<1x256xf32> to vector<16x256xf32>
    %8 = arith.addf %5, %7 : vector<16x256xf32>
    %c0_6 = arith.constant 0 : index
    %c0_7 = arith.constant 0 : index
    %9 = vector.load %arg9[%c0_6, %c0_7] : memref<16x256xf32, #tpu.memory_space<vmem>>, vector<16x256xf32>
    tpu.vector_store %arg9[%c0_6, %c0_7], %8 {strides = array<i32>} : memref<16x256xf32, #tpu.memory_space<vmem>>, vector<16x256xf32>,
    return
  }
  func.func @transform_0(%arg0: i32, %arg1: i32) -> (i32, i32) {
    %c0_i32 = arith.constant 0 : i32
    %c0_i32_0 = arith.constant 0 : i32
    return %arg0, %c0_i32 : i32, i32
  }
  func.func @transform_1(%arg0: i32, %arg1: i32) -> (i32, i32) {
    %c0_i32 = arith.constant 0 : i32
    %c0_i32_0 = arith.constant 0 : i32
    %c0_i32_1 = arith.constant 0 : i32
    return %c0_i32, %c0_i32_0 : i32, i32
  }
  func.func @transform_2(%arg0: i32, %arg1: i32) -> (i32, i32) {
    %c0_i32 = arith.constant 0 : i32
    %c0_i32_0 = arith.constant 0 : i32
    %c0_i32_1 = arith.constant 0 : i32
    return %c0_i32, %c0_i32_0 : i32, i32
  }
  func.func @transform_3(%arg0: i32, %arg1: i32) -> (i32, i32) {
    %c0_i32 = arith.constant 0 : i32
    %c0_i32_0 = arith.constant 0 : i32
    %c0_i32_1 = arith.constant 0 : i32
    return %c0_i32, %c0_i32_0 : i32, i32
  }
  func.func @transform_4(%arg0: i32, %arg1: i32) -> (i32, i32) {
    %c0_i32 = arith.constant 0 : i32
    %c0_i32_0 = arith.constant 0 : i32
    %c0_i32_1 = arith.constant 0 : i32
    return %c0_i32, %c0_i32_0 : i32, i32
  }
  func.func @transform_5(%arg0: i32, %arg1: i32) -> (i32, i32) {
    %c0_i32 = arith.constant 0 : i32
    %c0_i32_0 = arith.constant 0 : i32
    return %c0_i32, %arg1 : i32, i32
  }
  func.func @transform_6(%arg0: i32, %arg1: i32) -> (i32, i32) {
    %c0_i32 = arith.constant 0 : i32
    %c0_i32_0 = arith.constant 0 : i32
    return %c0_i32, %arg1 : i32, i32
  }
  func.func @transform_7(%arg0: i32, %arg1: i32) -> (i32, i32) {
    %c0_i32 = arith.constant 0 : i32
    return %arg0, %arg1 : i32, i32
  }
}

</mosaic_0001>

<llo_original>
// kernel: tpu_custom_call.1
$region0: #{tpu_custom_call.1}
  #allocation0 [shape = 'u32[]', space=smem, size = 0x4, offset = 0x4, fixed_abs, tag = 'smem constant byte address 0x4 - core index']
  #allocation1 [shape = 'u32[144,128]{1,0:T(1,128)}', space=vmem, size = 0x12000, scoped, tag = 'internal scratch']
  #allocation2 [shape = 'bf16[16,128]{1,0:T(16,128)(2,1)}', space=vmem, size = 0x1000, scoped, tag = 'scratch operand']
  %s0 = inlined_call_operand.hbm [shape: f32[16,128], index: 0, kind: input, shape index: {}]
  %s1 = inlined_call_operand.hbm [shape: f32[128,128], index: 1, kind: input, shape index: {}]
  %s2 = inlined_call_operand.vmem [shape: f32[1,128], index: 2, kind: input, shape index: {}]
  %s3 = inlined_call_operand.vmem [shape: f32[1,128], index: 3, kind: input, shape index: {}]
  %s4 = inlined_call_operand.vmem [shape: f32[1,128], index: 4, kind: input, shape index: {}]
  %s5 = inlined_call_operand.hbm [shape: bf16[128,256], index: 5, kind: input, shape index: {}]
  %s6 = inlined_call_operand.vmem [shape: f32[1,256], index: 6, kind: input, shape index: {}]
  %s7 = inlined_call_operand.hbm [shape: f32[16,256], index: 7, kind: output, shape index: {}]
  %s8 = sld [smem:[#allocation0]]
  $region54: #{tpu_custom_call.1} parent=0
    _
  %s10 = ssub.s32 1, %s8
  %s11 = scalar_select 0, %s10, %s8
  $region1: #{tpu_custom_call.1} parent=0
    #allocation3 [shape = 'u8[8192]{0}', space=vmem, size = 0x2000, scoped, tag = 'input window, operand 0, single buffered']
    #allocation4 [shape = 's32[1]{0}', space=sflag, size = 0x4, scoped, tag = 'scoped memory for tpu_custom_call.1']
    #allocation5 [shape = 's32[1]{0}', space=sflag, size = 0x4, scoped, tag = 'scoped memory for tpu_custom_call.1']
    #allocation6 [shape = 'u8[65536]{0}', space=vmem, size = 0x10000, scoped, tag = 'input window, operand 1, single buffered']
    #allocation7 [shape = 's32[1]{0}', space=sflag, size = 0x4, scoped, tag = 'scoped memory for tpu_custom_call.1']
    #allocation8 [shape = 'u8[65536]{0}', space=vmem, size = 0x10000, scoped, tag = 'input window, operand 5, single buffered']
    #allocation9 [shape = 'u8[16384]{0}', space=vmem, size = 0x4000, scoped, tag = 'output window, operand 0, single buffered']
    %12 = vsyncpa [#allocation4], 0
    %13 = vsyncpa [#allocation7], 0
    %14 = vsyncpa [#allocation5], 0
    // Predicated region
    $region2: #{tpu_custom_call.1} parent=1 // pred_check
      _
    $region3: #{tpu_custom_call.1} parent=1 // pred_check_branch
      %16 = sbr.rel (0) target = $region5
    $region4: #{tpu_custom_call.1} parent=1 // pred_region
      %s18 = ssub.s32 256, 256
      %19 = vsyncadd [#allocation4], %s18
      %s20 = sshll.u32 [#allocation3], 4
      %s21 = int_to_ptr.vmem [resolvable:$true] %s20
      %26 = dma.hbm_to_vmem [thread:$0]  %s0, 256, %s21, [#allocation4], 128, 128, 8
    $region5: #{tpu_custom_call.1} parent=1 // pred_fallthru
      _
    // Predicated region
    $region6: #{tpu_custom_call.1} parent=1 // pred_check
      _
    $region7: #{tpu_custom_call.1} parent=1 // pred_check_branch
      %28 = sbr.rel (0) target = $region9
    $region8: #{tpu_custom_call.1} parent=1 // pred_region
      %s30 = ssub.s32 2048, 2048
      %31 = vsyncadd [#allocation7], %s30
      %s32 = sshll.u32 [#allocation6], 4
      %s33 = int_to_ptr.vmem [resolvable:$true] %s32
      %38 = dma.hbm_to_vmem [thread:$0]  %s1, 2048, %s33, [#allocation7], 128, 128, 8
    $region9: #{tpu_custom_call.1} parent=1 // pred_fallthru
      _
    // Predicated region
    $region10: #{tpu_custom_call.1} parent=1 // pred_check
      _
    $region11: #{tpu_custom_call.1} parent=1 // pred_check_branch
      %40 = sbr.rel (0) target = $region13
    $region12: #{tpu_custom_call.1} parent=1 // pred_region
      _
    $region13: #{tpu_custom_call.1} parent=1 // pred_fallthru
      _
    // Predicated region
    $region14: #{tpu_custom_call.1} parent=1 // pred_check
      _
    $region15: #{tpu_custom_call.1} parent=1 // pred_check_branch
      %42 = sbr.rel (0) target = $region17
    $region16: #{tpu_custom_call.1} parent=1 // pred_region
      _
    $region17: #{tpu_custom_call.1} parent=1 // pred_fallthru
      _
    // Predicated region
    $region18: #{tpu_custom_call.1} parent=1 // pred_check
      _
    $region19: #{tpu_custom_call.1} parent=1 // pred_check_branch
      %44 = sbr.rel (0) target = $region21
    $region20: #{tpu_custom_call.1} parent=1 // pred_region
      _
    $region21: #{tpu_custom_call.1} parent=1 // pred_fallthru
      _
    // Predicated region
    $region22: #{tpu_custom_call.1} parent=1 // pred_check
      _
    $region23: #{tpu_custom_call.1} parent=1 // pred_check_branch
      %46 = sbr.rel (0) target = $region25
    $region24: #{tpu_custom_call.1} parent=1 // pred_region
      %s48 = ssub.s32 2048, 2048
      %49 = vsyncadd [#allocation7], %s48
      %s50 = sshll.u32 [#allocation8], 4
      %s51 = int_to_ptr.vmem [resolvable:$true] %s50
      %56 = dma.hbm_to_vmem [thread:$0]  %s5, 2048, %s51, [#allocation7], 128, 128, 8
    $region25: #{tpu_custom_call.1} parent=1 // pred_fallthru
      _
    // Predicated region
    $region26: #{tpu_custom_call.1} parent=1 // pred_check
      _
    $region27: #{tpu_custom_call.1} parent=1 // pred_check_branch
      %58 = sbr.rel (0) target = $region29
    $region28: #{tpu_custom_call.1} parent=1 // pred_region
      _
    $region29: #{tpu_custom_call.1} parent=1 // pred_fallthru
      _
    // Predicated region
    $region30: #{tpu_custom_call.1} parent=1 // pred_check
      _
    $region31: #{tpu_custom_call.1} parent=1 // pred_check_branch
      %60 = sbr.rel (0) target = $region33
    $region32: #{tpu_custom_call.1} parent=1 // pred_region
      %61 = dma.done [#allocation4], 256
    $region33: #{tpu_custom_call.1} parent=1 // pred_fallthru
      _
    // Predicated region
    $region34: #{tpu_custom_call.1} parent=1 // pred_check
      _
    $region35: #{tpu_custom_call.1} parent=1 // pred_check_branch
      %63 = sbr.rel (0) target = $region37
    $region36: #{tpu_custom_call.1} parent=1 // pred_region
      %64 = dma.done [#allocation7], 2048
    $region37: #{tpu_custom_call.1} parent=1 // pred_fallthru
      _
    // Predicated region
    $region38: #{tpu_custom_call.1} parent=1 // pred_check
      _
    $region39: #{tpu_custom_call.1} parent=1 // pred_check_branch
      %66 = sbr.rel (0) target = $region41
    $region40: #{tpu_custom_call.1} parent=1 // pred_region
      %67 = dma.done [#allocation7], 2048
    $region41: #{tpu_custom_call.1} parent=1 // pred_fallthru
      _
    %p69 = scmp.eq.s32.totalorder 0, 0
    // Predicated region
    $region42: #{tpu_custom_call.1} parent=1 // pred_check
      %p70 = pneg %p69
    $region43: #{tpu_custom_call.1} parent=1 // pred_check_branch
      %72 = sbr.rel (%p70) target = $region45
    $region44: #{tpu_custom_call.1} parent=1 // pred_region
      %v73 = vld [vmem:[#allocation3] sm:$0xff]
      %v74 = vld [vmem:[#allocation3 + $0x8] sm:$0xff]
      %v75 = vld [vmem:[#allocation6] sm:$0xff]
      %v76 = vld [vmem:[#allocation6 + $0x8] sm:$0xff]
      %v77 = vld [vmem:[#allocation6 + $0x10] sm:$0xff]
      %v78 = vld [vmem:[#allocation6 + $0x18] sm:$0xff]
      %v79 = vld [vmem:[#allocation6 + $0x20] sm:$0xff]
      %v80 = vld [vmem:[#allocation6 + $0x28] sm:$0xff]
      %v81 = vld [vmem:[#allocation6 + $0x30] sm:$0xff]
      %v82 = vld [vmem:[#allocation6 + $0x38] sm:$0xff]
      %v83 = vld [vmem:[#allocation6 + $0x40] sm:$0xff]
      %v84 = vld [vmem:[#allocation6 + $0x48] sm:$0xff]
      %v85 = vld [vmem:[#allocation6 + $0x50] sm:$0xff]
      %v86 = vld [vmem:[#allocation6 + $0x58] sm:$0xff]
      %v87 = vld [vmem:[#allocation6 + $0x60] sm:$0xff]
      %v88 = vld [vmem:[#allocation6 + $0x68] sm:$0xff]
      %v89 = vld [vmem:[#allocation6 + $0x70] sm:$0xff]
      %v90 = vld [vmem:[#allocation6 + $0x78] sm:$0xff]
      %v91 = vld [vmem:[%s2] sm:$0x1]
      %v93 = vlaneseq
      %v94 = vshrl.u32 %v93, 7
      %v95 = vsub.s32 0, %v94
      %v96 = vrot.slane %v91, %v95
      %98 = vmatprep.subr.mxu0 0.0
      %99 = vmatpush1.msra.mxu0 %v75
      %100 = vmatprep.subr.mxu0 0.0
      %101 = vmatpush1.msra.mxu0 %v76
      %102 = vmatprep.subr.mxu0 0.0
      %103 = vmatpush1.msra.mxu0 %v77
      %104 = vmatprep.subr.mxu0 0.0
      %105 = vmatpush1.msra.mxu0 %v78
      %106 = vmatprep.subr.mxu0 0.0
      %107 = vmatpush1.msra.mxu0 %v79
      %108 = vmatprep.subr.mxu0 0.0
      %109 = vmatpush1.msra.mxu0 %v80
      %110 = vmatprep.subr.mxu0 0.0
      %111 = vmatpush1.msra.mxu0 %v81
      %112 = vmatprep.subr.mxu0 0.0
      %113 = vmatpush1.msra.mxu0 %v82
      %114 = vmatprep.subr.mxu0 0.0
      %115 = vmatpush1.msra.mxu0 %v83
      %116 = vmatprep.subr.mxu0 0.0
      %117 = vmatpush1.msra.mxu0 %v84
      %118 = vmatprep.subr.mxu0 0.0
      %119 = vmatpush1.msra.mxu0 %v85
      %120 = vmatprep.subr.mxu0 0.0
      %121 = vmatpush1.msra.mxu0 %v86
      %122 = vmatprep.subr.mxu0 0.0
      %123 = vmatpush1.msra.mxu0 %v87
      %124 = vmatprep.subr.mxu0 0.0
      %125 = vmatpush1.msra.mxu0 %v88
      %126 = vmatprep.subr.mxu0 0.0
      %127 = vmatpush1.msra.mxu0 %v89
      %128 = vmatprep.subr.mxu0 0.0
      %129 = vmatpush1.msra.mxu0 %v90
      %130 = vmatprep.subr.mxu0 0.0
      %131 = vmatpush1.msra.mxu0 0.0
      %132 = vmatprep.subr.mxu0 0.0
      %133 = vmatpush1.msra.mxu0 0.0
      %134 = vmatprep.subr.mxu0 0.0
      %135 = vmatpush1.msra.mxu0 0.0
      %136 = vmatprep.subr.mxu0 0.0
      %137 = vmatpush1.msra.mxu0 0.0
      %138 = vmatprep.subr.mxu0 0.0
      %139 = vmatpush1.msra.mxu0 0.0
      %140 = vmatprep.subr.mxu0 0.0
      %141 = vmatpush1.msra.mxu0 0.0
      %142 = vmatprep.subr.mxu0 0.0
      %143 = vmatpush1.msra.mxu0 0.0
      %144 = vmatprep.subr.mxu0 0.0
      %145 = vmatpush1.msra.mxu0 0.0
      %146 = vmatprep.subr.mxu0 0.0
      %147 = vmatpush1.msra.mxu0 0.0
      %148 = vmatprep.subr.mxu0 0.0
      %149 = vmatpush1.msra.mxu0 0.0
      %150 = vmatprep.subr.mxu0 0.0
      %151 = vmatpush1.msra.mxu0 0.0
      %152 = vmatprep.subr.mxu0 0.0
      %153 = vmatpush1.msra.mxu0 0.0
      %154 = vmatprep.subr.mxu0 0.0
      %155 = vmatpush1.msra.mxu0 0.0
      %156 = vmatprep.subr.mxu0 0.0
      %157 = vmatpush1.msra.mxu0 0.0
      %158 = vmatprep.subr.mxu0 0.0
      %159 = vmatpush1.msra.mxu0 0.0
      %160 = vmatprep.subr.mxu0 0.0
      %161 = vmatpush1.msra.mxu0 0.0
      %162 = vmatprep.mubr.f32.mxu0 0.0
      %163 = vmatmul.mubr.f32.gmra.mrb[0].mxu0 %v73
      %v164 = vpop.f32.mrb[0].mxu0
      %v165 = vadd.f32 %v96, %v164
      %v166 = vpop.f32.mrb[0].mxu0
      %167 = vmatprep.mubr.f32.mxu0 0.0
      %168 = vmatmul.mubr.f32.gmra.mrb[0].mxu0 %v74
      %v169 = vpop.f32.mrb[0].mxu0
      %v170 = vadd.f32 %v96, %v169
      %v171 = vpop.f32.mrb[0].mxu0
      %172 = vdwg.mxu0
      %v173 = vmul.f32 %v165, 0.5
      %v174 = vmul.f32 %v170, 0.5
      %v175 = vmul.f32 %v165, 0.70710677
      %v176 = vmul.f32 %v170, 0.70710677
      %v177 = verf.f32.pop %v175
      %v178 = verf.f32.pop %v176
      %v179 = vadd.f32 %v177, 1.0
      %v180 = vadd.f32 %v178, 1.0
      %v181 = vmul.f32 %v173, %v179
      %v182 = vmul.f32 %v174, %v180
      %183 = vadd.xlane.f32.xlu0 %v181
      %v184 = vpop.xlane.xlu0 %183
      %185 = vadd.xlane.f32.xlu0 %v182
      %v186 = vpop.xlane.xlu0 %185
      %v187 = vrcp.pop 128.0
      %v188 = vmul.f32 %v184, %v187
      %v189 = vmul.f32 %v186, %v187
      %v190 = vsub.f32 %v181, %v188
      %v191 = vsub.f32 %v182, %v189
      %v192 = vmul.f32 %v190, %v190
      %v193 = vmul.f32 %v191, %v191
      %194 = vadd.xlane.f32.xlu0 %v192
      %v195 = vpop.xlane.xlu0 %194
      %196 = vadd.xlane.f32.xlu0 %v193
      %v197 = vpop.xlane.xlu0 %196
      %v198 = vmul.f32 %v195, %v187
      %v199 = vmul.f32 %v197, %v187
      %v200 = vadd.f32 %v198, 1e-12
      %v201 = vadd.f32 %v199, 1e-12
      %v202 = vrsqrt.pop %v200
      %v203 = vrsqrt.pop %v201
      %v204 = vmul.f32 %v190, %v202
      %v205 = vmul.f32 %v191, %v203
      %v206 = vld [vmem:[%s3] sm:$0x1]
      %v208 = vlaneseq
      %v209 = vshrl.u32 %v208, 7
      %v210 = vsub.s32 0, %v209
      %v211 = vrot.slane %v206, %v210
      %v213 = vmul.f32 %v204, %v211
      %v214 = vmul.f32 %v205, %v211
      %v215 = vld [vmem:[%s4] sm:$0x1]
      %v217 = vlaneseq
      %v218 = vshrl.u32 %v217, 7
      %v219 = vsub.s32 0, %v218
      %v220 = vrot.slane %v215, %v219
      %v222 = vadd.f32 %v213, %v220
      %v223 = vadd.f32 %v214, %v220
      %v224 = vpack.c.bf16 %v223, %v222
      %225 = vst [vmem:[#allocation2] sm:$0xff] %v224
    $region45: #{tpu_custom_call.1} parent=1 // pred_fallthru
      _
    %v226 = vld [vmem:[#allocation2] sm:$0xff]
    %v227 = vld [vmem:[#allocation8] sm:$0xff]
    %v228 = vld [vmem:[#allocation8 + $0x8] sm:$0xff]
    %v229 = vld [vmem:[#allocation8 + $0x10] sm:$0xff]
    %v230 = vld [vmem:[#allocation8 + $0x18] sm:$0xff]
    %v231 = vld [vmem:[#allocation8 + $0x20] sm:$0xff]
    %v232 = vld [vmem:[#allocation8 + $0x28] sm:$0xff]
    %v233 = vld [vmem:[#allocation8 + $0x30] sm:$0xff]
    %v234 = vld [vmem:[#allocation8 + $0x38] sm:$0xff]
    %v235 = vld [vmem:[#allocation8 + $0x40] sm:$0xff]
    %v236 = vld [vmem:[#allocation8 + $0x48] sm:$0xff]
    %v237 = vld [vmem:[#allocation8 + $0x50] sm:$0xff]
    %v238 = vld [vmem:[#allocation8 + $0x58] sm:$0xff]
    %v239 = vld [vmem:[#allocation8 + $0x60] sm:$0xff]
    %v240 = vld [vmem:[#allocation8 + $0x68] sm:$0xff]
    %v241 = vld [vmem:[#allocation8 + $0x70] sm:$0xff]
    %v242 = vld [vmem:[#allocation8 + $0x78] sm:$0xff]
    %v243 = vld [vmem:[%s6] sm:$0x3]
    %v245 = vlaneseq
    %v246 = vshrl.u32 %v245, 7
    %v247 = vsub.s32 0, %v246
    %v248 = vrot.slane %v243, %v247
    %v249 = vlaneseq
    %v250 = vshrl.u32 %v249, 7
    %v251 = vsub.s32 1, %v250
    %v252 = vrot.slane %v243, %v251
    %v271 = vunpack.c.l.b16 %v227
    %v272 = vunpack.c.h.b16 %v227
    %v273 = vunpack.c.l.b16 %v228
    %v274 = vunpack.c.h.b16 %v228
    %v275 = vunpack.c.l.b16 %v229
    %v276 = vunpack.c.h.b16 %v229
    %v277 = vunpack.c.l.b16 %v230
    %v278 = vunpack.c.h.b16 %v230
    %v279 = vunpack.c.l.b16 %v231
    %v280 = vunpack.c.h.b16 %v231
    %v281 = vunpack.c.l.b16 %v232
    %v282 = vunpack.c.h.b16 %v232
    %v283 = vunpack.c.l.b16 %v233
    %v284 = vunpack.c.h.b16 %v233
    %v285 = vunpack.c.l.b16 %v234
    %v286 = vunpack.c.h.b16 %v234
    %v287 = vunpack.c.l.b16 %v235
    %v288 = vunpack.c.h.b16 %v235
    %v289 = vunpack.c.l.b16 %v236
    %v290 = vunpack.c.h.b16 %v236
    %v291 = vunpack.c.l.b16 %v237
    %v292 = vunpack.c.h.b16 %v237
    %v293 = vunpack.c.l.b16 %v238
    %v294 = vunpack.c.h.b16 %v238
    %v295 = vunpack.c.l.b16 %v239
    %v296 = vunpack.c.h.b16 %v239
    %v297 = vunpack.c.l.b16 %v240
    %v298 = vunpack.c.h.b16 %v240
    %v299 = vunpack.c.l.b16 %v241
    %v300 = vunpack.c.h.b16 %v241
    %v301 = vunpack.c.l.b16 %v242
    %v302 = vunpack.c.h.b16 %v242
    %v303 = vpack.c.b16 %v273, %v271
    %v304 = vpack.c.b16 %v274, %v272
    %v305 = vpack.c.b16 %v277, %v275
    %v306 = vpack.c.b16 %v278, %v276
    %v307 = vpack.c.b16 %v281, %v279
    %v308 = vpack.c.b16 %v282, %v280
    %v309 = vpack.c.b16 %v285, %v283
    %v310 = vpack.c.b16 %v286, %v284
    %v311 = vpack.c.b16 %v289, %v287
    %v312 = vpack.c.b16 %v290, %v288
    %v313 = vpack.c.b16 %v293, %v291
    %v314 = vpack.c.b16 %v294, %v292
    %v315 = vpack.c.b16 %v297, %v295
    %v316 = vpack.c.b16 %v298, %v296
    %v317 = vpack.c.b16 %v301, %v299
    %v318 = vpack.c.b16 %v302, %v300
    %335 = vmatprep.subr.bf16.mxu0 %v304
    %336 = vmatpush1.bf16.msra.mxu0 %v303
    %337 = vmatprep.subr.bf16.mxu0 %v306
    %338 = vmatpush1.bf16.msra.mxu0 %v305
    %339 = vmatprep.subr.bf16.mxu0 %v308
    %340 = vmatpush1.bf16.msra.mxu0 %v307
    %341 = vmatprep.subr.bf16.mxu0 %v310
    %342 = vmatpush1.bf16.msra.mxu0 %v309
    %343 = vmatprep.subr.bf16.mxu0 %v312
    %344 = vmatpush1.bf16.msra.mxu0 %v311
    %345 = vmatprep.subr.bf16.mxu0 %v314
    %346 = vmatpush1.bf16.msra.mxu0 %v313
    %347 = vmatprep.subr.bf16.mxu0 %v316
    %348 = vmatpush1.bf16.msra.mxu0 %v315
    %349 = vmatprep.subr.bf16.mxu0 %v318
    %350 = vmatpush1.bf16.msra.mxu0 %v317
    %351 = vmatprep.subr.bf16.mxu0 0
    %352 = vmatpush1.bf16.msra.mxu0 0
    %353 = vmatprep.subr.bf16.mxu0 0
    %354 = vmatpush1.bf16.msra.mxu0 0
    %355 = vmatprep.subr.bf16.mxu0 0
    %356 = vmatpush1.bf16.msra.mxu0 0
    %357 = vmatprep.subr.bf16.mxu0 0
    %358 = vmatpush1.bf16.msra.mxu0 0
    %359 = vmatprep.subr.bf16.mxu0 0
    %360 = vmatpush1.bf16.msra.mxu0 0
    %361 = vmatprep.subr.bf16.mxu0 0
    %362 = vmatpush1.bf16.msra.mxu0 0
    %363 = vmatprep.subr.bf16.mxu0 0
    %364 = vmatpush1.bf16.msra.mxu0 0
    %365 = vmatprep.subr.bf16.mxu0 0
    %366 = vmatpush1.bf16.msra.mxu0 0
    %367 = vmatprep.mubr.bf16.mxu0 0
    %368 = vmatmul.mubr.bf16.gmra.mrb[0].mxu0 %v226
    %v369 = vpop.f32.mrb[0].mxu0
    %v370 = vadd.f32 %v248, %v369
    %v371 = vpop.f32.mrb[0].mxu0
    %v372 = vadd.f32 %v252, %v371
    %v373 = vpop.f32.mrb[0].mxu0
    %v374 = vadd.f32 %v248, %v373
    %v375 = vpop.f32.mrb[0].mxu0
    %v376 = vadd.f32 %v252, %v375
    %377 = vdwg.mxu0
    %378 = vst [vmem:[#allocation9] sm:$0xff] %v370
    %379 = vst [vmem:[#allocation9 + $0x8] sm:$0xff] %v372
    %380 = vst [vmem:[#allocation9 + $0x10] sm:$0xff] %v374
    %381 = vst [vmem:[#allocation9 + $0x18] sm:$0xff] %v376
    // Predicated region
    $region46: #{tpu_custom_call.1} parent=1 // pred_check
      _
    $region47: #{tpu_custom_call.1} parent=1 // pred_check_branch
      %383 = sbr.rel (0) target = $region49
    $region48: #{tpu_custom_call.1} parent=1 // pred_region
      %s385 = ssub.s32 512, 512
      %386 = vsyncadd [#allocation5], %s385
      %s387 = sshll.u32 [#allocation9], 4
      %s388 = int_to_ptr.vmem [resolvable:$true] %s387
      %393 = dma.vmem_to_hbm [thread:$0]  %s388, 512, %s7, [#allocation5], 256, 256, 16
    $region49: #{tpu_custom_call.1} parent=1 // pred_fallthru
      _
    // Predicated region
    $region50: #{tpu_custom_call.1} parent=1 // pred_check
      _
    $region51: #{tpu_custom_call.1} parent=1 // pred_check_branch
      %395 = sbr.rel (0) target = $region53
    $region52: #{tpu_custom_call.1} parent=1 // pred_region
      %396 = dma.done [#allocation5], 512
    $region53: #{tpu_custom_call.1} parent=1 // pred_fallthru
      _
    %397 = vsyncpa [#allocation4], 1
    %398 = vsyncpa [#allocation7], 1
    %399 = vsyncpa [#allocation5], 1

</llo_original>
